<compile_context>
chip_gen: v7x
topology: tpu7x:2x2x1
jax: 0.10.0
libtpu: 0.0.40
codegen_flags: <defaults>
</compile_context>

<pallas_src>
import numpy as np
import jax
import jax.numpy as jnp
from jax.experimental import pallas as pl
from jax.experimental.pallas import tpu as pltpu


# ---------------------------------------------------------------------------
# Anchor generation (host-side numpy glue, identical to the reference module).
# ---------------------------------------------------------------------------
def generate_anchor_base(base_size=16, ratios=(1,), anchor_scales=(1, 2, 4, 8)):
    py = base_size / 2.0
    px = base_size / 2.0
    anchor_base = np.zeros((len(ratios) * len(anchor_scales), 4), dtype=np.float32)
    for i, r in enumerate(ratios):
        for j, s in enumerate(anchor_scales):
            h = base_size * s * np.sqrt(r)
            w = base_size * s * np.sqrt(1.0 / r)
            idx = i * len(anchor_scales) + j
            anchor_base[idx, 0] = py - h / 2.0
            anchor_base[idx, 1] = px - w / 2.0
            anchor_base[idx, 2] = py + h / 2.0
            anchor_base[idx, 3] = px + w / 2.0
    return anchor_base


def _enumerate_shifted_anchor(anchor_base, feat_stride, height, width):
    shift_y = np.arange(0, height * feat_stride, feat_stride)
    shift_x = np.arange(0, width * feat_stride, feat_stride)
    shift_x, shift_y = np.meshgrid(shift_x, shift_y)
    shift = np.stack(
        (shift_y.ravel(), shift_x.ravel(), shift_y.ravel(), shift_x.ravel()), axis=1
    )
    A = anchor_base.shape[0]
    K = shift.shape[0]
    anchor = anchor_base.reshape((1, A, 4)) + shift.reshape((1, K, 4)).transpose((1, 0, 2))
    return anchor.reshape((K * A, 4)).astype(np.float32)


# ---------------------------------------------------------------------------
# Pallas kernel: two lane-dense MXU matmuls + bias + ReLU.
# ---------------------------------------------------------------------------
def _pgn_kernel(cols_ref, w1_ref, b1_ref, w2_ref, b2_ref, out_ref):
    # cols_ref: (1, Kp, T)  bf16   im2col block, channel-major rows (tap*C + c)
    # w1_ref  : (Mp, Kp)    bf16   conv1 weight, transposed
    # b1_ref  : (Mp, 1)     f32
    # w2_ref  : (Ap, Mp)    bf16   1x1 "count" weight, transposed
    # b2_ref  : (Ap, 1)     f32
    # out_ref : (1, Ap, T)  f32    lane-dense patch counts
    acc = jnp.dot(w1_ref[...], cols_ref[0],
                  preferred_element_type=jnp.float32)              # (Mp, T) f32
    h = jnp.maximum(acc + b1_ref[...], 0.0).astype(jnp.bfloat16)   # bias+ReLU in f32
    counts = jnp.dot(w2_ref[...], h,
                     preferred_element_type=jnp.float32)           # (Ap, T) f32
    out_ref[0] = (counts + b2_ref[...]).astype(out_ref.dtype)


# ---------------------------------------------------------------------------
# Tiling helpers.
# ---------------------------------------------------------------------------
def _round_up(v, m):
    return ((v + m - 1) // m) * m


def _pick_spatial_tile(hw_pad, k_pad, m_pad, a_pad, n_batch, weight_bytes,
                       target=2048, pipeline_budget=40 * 2 ** 20):
    """Largest lane-dense (multiple of 128) tile of the padded spatial axis
    that divides hw_pad, targets ~`target` pixels/step and fits the pipelined
    VMEM budget (sized for v7x's 64 MiB per-core VMEM)."""
    q = hw_pad // 128
    cands = sorted(128 * d for d in range(1, q + 1) if q % d == 0)

    def block_bytes(t):
        in_blk = 2 * k_pad * t * 2          # double-buffered bf16 input block
        out_blk = 2 * a_pad * t * 4         # double-buffered f32 output block
        interm = m_pad * t * (4 + 2)        # f32 accumulator + bf16 hidden
        return in_blk + out_blk + interm

    fitting = [t for t in cands if weight_bytes + block_bytes(t) <= pipeline_budget]
    if not fitting:
        fitting = [cands[0]]                # smallest lane-dense tile (128)
    # Keep >= 2 grid steps at batch 1 so both v7x TensorCores get work.
    if n_batch == 1 and hw_pad >= 256:
        multi = [t for t in fitting if hw_pad // t >= 2]
        if multi:
            fitting = multi
    below = [t for t in fitting if t <= target]
    return max(below) if below else min(fitting)


# ---------------------------------------------------------------------------
# Forward pass.
# ---------------------------------------------------------------------------
def pgn_forward(x_nchw, w1_hwio, b1, w2_mo, b2, anchor_base, feat_stride,
                spatial_tile=None):
    """Forward pass of PatchGenerationNetwork.

    x_nchw  : (N, C, H, W) float32 (PyTorch layout)
    w1_hwio : (3, 3, C, M)  conv1 weight        b1 : (M,)
    w2_mo   : (M, A)        1x1 count weight    b2 : (A,)
    returns (anchor, patch_counts):
        anchor       : (H*W*A, 4) float32 numpy
        patch_counts : (N, H*W*A, 1) float32 (torch permute(0,2,3,1).view order)

    Matmuls run with bf16 operands / f32 accumulation (intentional mixed
    precision; a semantic deviation from the all-f32 torch module).
    """
    n, c, hh, ww = x_nchw.shape
    m = w1_hwio.shape[-1]
    a = w2_mo.shape[-1]
    hw = hh * ww

    anchor = _enumerate_shifted_anchor(np.asarray(anchor_base), feat_stride, hh, ww)

    # --- padded sizes (sublane / lane friendly) -----------------------------
    k = 9 * c
    k_pad = _round_up(k, 16)        # bf16 sublane packing on the im2col rows
    m_pad = _round_up(m, 16)
    a_pad = _round_up(a, 8)
    hw_pad = _round_up(hw, 128)     # lane-dense spatial axis

    # --- im2col in the wrapper: channel-major (N, 9C, H*W) bf16 -------------
    # cols[n, (ky*3+kx)*C + c, y*W + x] == x_pad[n, c, y+ky, x+kx]
    x_pad = jnp.pad(x_nchw.astype(jnp.bfloat16), ((0, 0), (0, 0), (1, 1), (1, 1)))
    taps = [x_pad[:, :, ky:ky + hh, kx:kx + ww]
            for ky in range(3) for kx in range(3)]            # 9 x (N, C, H, W)
    cols = jnp.concatenate(taps, axis=1).reshape(n, k, hw)
    cols = jnp.pad(cols, ((0, 0), (0, k_pad - k), (0, hw_pad - hw)))

    # --- weights / biases: transposed + zero-padded --------------------------
    w1_mk = jnp.transpose(w1_hwio.reshape(k, m), (1, 0)).astype(jnp.bfloat16)
    w1_mk = jnp.pad(w1_mk, ((0, m_pad - m), (0, k_pad - k)))        # (Mp, Kp)
    w2_am = jnp.transpose(w2_mo, (1, 0)).astype(jnp.bfloat16)
    w2_am = jnp.pad(w2_am, ((0, a_pad - a), (0, m_pad - m)))        # (Ap, Mp)
    b1_p = jnp.pad(b1.astype(jnp.float32), (0, m_pad - m)).reshape(m_pad, 1)
    b2_p = jnp.pad(b2.astype(jnp.float32), (0, a_pad - a)).reshape(a_pad, 1)

    # Weight blocks have constant index_maps (fetched once), but the pipeliner
    # still allocates two buffers each; budget for that.
    weight_bytes = 2 * (m_pad * k_pad * 2 + a_pad * m_pad * 2
                        + m_pad * 4 + a_pad * 4)

    if spatial_tile is not None:
        t = int(spatial_tile)
        if t <= 0 or t % 128 != 0 or hw_pad % t != 0:
            raise ValueError(
                f"spatial_tile={spatial_tile} must be a positive multiple of 128 "
                f"dividing the padded spatial extent {hw_pad}")
    else:
        t = _pick_spatial_tile(hw_pad, k_pad, m_pad, a_pad, n, weight_bytes)
    n_t = hw_pad // t

    flops = 2 * n * hw_pad * k_pad * m_pad + 2 * n * hw_pad * m_pad * a_pad
    bytes_accessed = (cols.size * 2 + m_pad * k_pad * 2 + a_pad * m_pad * 2
                      + m_pad * 4 + a_pad * 4 + n * a_pad * hw_pad * 4)
    cost = pl.CostEstimate(flops=flops, transcendentals=0,
                           bytes_accessed=bytes_accessed)

    step_bytes = (weight_bytes
                  + 2 * k_pad * t * 2          # double-buffered input blocks
                  + 2 * a_pad * t * 4          # double-buffered output blocks
                  + m_pad * t * (4 + 2))       # f32 acc + bf16 hidden intermediates
    # Cap at 48 MiB: headroom below v7x's 64 MiB per-core VMEM; fine on v5e/v6e.
    vmem_limit = int(min(48 * 2 ** 20, max(16 * 2 ** 20, int(1.5 * step_bytes))))

    def _const_spec(shape):
        return pl.BlockSpec(shape, lambda *_: (0,) * len(shape))

    grid_spec = pltpu.PrefetchScalarGridSpec(
        num_scalar_prefetch=0,
        grid=(n, n_t),
        in_specs=[
            pl.BlockSpec((1, k_pad, t), lambda b, s: (b, 0, s)),
            _const_spec((m_pad, k_pad)),
            _const_spec((m_pad, 1)),
            _const_spec((a_pad, m_pad)),
            _const_spec((a_pad, 1)),
        ],
        out_specs=pl.BlockSpec((1, a_pad, t), lambda b, s: (b, 0, s)),
    )

    counts_full = pl.pallas_call(
        _pgn_kernel,
        out_shape=jax.ShapeDtypeStruct((n, a_pad, hw_pad), jnp.float32),
        grid_spec=grid_spec,
        compiler_params=pltpu.CompilerParams(
            dimension_semantics=("parallel", "parallel"),
            vmem_limit_bytes=vmem_limit,
        ),
        cost_estimate=cost,
    )(cols, w1_mk, b1_p, w2_am, b2_p)

    # (N, Ap, HWp) -> drop padding -> (N, H*W, A) -> (N, H*W*A, 1)
    # matches torch's permute(0, 2, 3, 1).contiguous().view(n, -1, 1).
    counts = counts_full[:, :a, :hw]
    patch_counts = jnp.transpose(counts, (0, 2, 1)).reshape(n, hw * a, 1)
    return anchor, patch_counts


# ---------------------------------------------------------------------------
# Pure-JAX reference (NCHW convs) for verification.
# ---------------------------------------------------------------------------
def pgn_reference(x_nchw, w1_hwio, b1, w2_mo, b2, cast_dtype=None):
    """Optionally casts matmul inputs to `cast_dtype` (e.g. bf16) to mirror the
    kernel's mixed precision; accumulation stays f32 either way."""
    n = x_nchw.shape[0]
    if cast_dtype is not None:
        x_nchw = x_nchw.astype(cast_dtype)
        w1_hwio = w1_hwio.astype(cast_dtype)
        w2_mo = w2_mo.astype(cast_dtype)
    w1_oihw = jnp.transpose(w1_hwio, (3, 2, 0, 1))            # (M, C, 3, 3)
    w2_oihw = jnp.transpose(w2_mo, (1, 0))[:, :, None, None]  # (A, M, 1, 1)
    h = jax.lax.conv_general_dilated(
        x_nchw, w1_oihw, (1, 1), "SAME",
        dimension_numbers=("NCHW", "OIHW", "NCHW"),
        preferred_element_type=jnp.float32,
    ) + b1[None, :, None, None]
    h = jnp.maximum(h, 0.0)
    if cast_dtype is not None:
        h = h.astype(cast_dtype)
    pc = jax.lax.conv_general_dilated(
        h, w2_oihw, (1, 1), "VALID",
        dimension_numbers=("NCHW", "OIHW", "NCHW"),
        preferred_element_type=jnp.float32,
    ) + b2[None, :, None, None]
    pc = jnp.transpose(pc, (0, 2, 3, 1)).reshape(n, -1, 1)
    return pc


if __name__ == "__main__":
    RATIOS = (1,)
    ANCHOR_SCALES = (1, 2, 4, 8)
    FEAT_STRIDE = 16
    anchor_base = generate_anchor_base(
        base_size=16, ratios=RATIOS, anchor_scales=ANCHOR_SCALES
    )
    n_anchor = anchor_base.shape[0]  # A = 4

    key = jax.random.PRNGKey(0)

    # --- Config 1: N=2, C=8, M=16, H=W=8 (one spatial tile per image) --------
    N, C_IN, MID, H, W = 2, 8, 16, 8, 8
    kx, kw1, kb1, kw2, kb2, key = jax.random.split(key, 6)
    x = jax.random.normal(kx, (N, C_IN, H, W), dtype=jnp.float32)
    # normal_init(stddev=0.01); biases made non-zero to exercise the bias path
    # (the module's normal_init would zero them).
    w1 = jax.random.normal(kw1, (3, 3, C_IN, MID), dtype=jnp.float32) * 0.01
    b1 = jax.random.normal(kb1, (MID,), dtype=jnp.float32) * 0.01
    w2 = jax.random.normal(kw2, (MID, n_anchor), dtype=jnp.float32) * 0.01
    b2 = jax.random.normal(kb2, (n_anchor,), dtype=jnp.float32) * 0.01

    anchor, patch_counts = pgn_forward(x, w1, b1, w2, b2, anchor_base, FEAT_STRIDE)
    patch_counts = jax.block_until_ready(patch_counts)

    # Tight check vs a reference using the same bf16 operand precision.
    ref_bf16 = jax.block_until_ready(
        pgn_reference(x, w1, b1, w2, b2, cast_dtype=jnp.bfloat16))
    np.testing.assert_allclose(np.asarray(patch_counts), np.asarray(ref_bf16),
                               rtol=1e-2, atol=1e-4)
    # Loose check vs the full-f32 module semantics (bf16 rounding only).
    ref_f32 = jax.block_until_ready(pgn_reference(x, w1, b1, w2, b2))
    np.testing.assert_allclose(np.asarray(patch_counts), np.asarray(ref_f32),
                               rtol=1e-1, atol=1e-3)
    assert anchor.shape == (H * W * n_anchor, 4)
    assert patch_counts.shape == (N, H * W * n_anchor, 1)

    # --- Config 2: N=1, H*W=256 -> auto tile 128, grid (1, 2) ----------------
    # (exercises the spatial-tiling path and the >=2-steps-at-batch-1 rule)
    N2, C2, M2, H2, W2 = 1, 8, 32, 8, 32
    kx2, kw12, kw22, key = jax.random.split(key, 4)
    x2 = jax.random.normal(kx2, (N2, C2, H2, W2), dtype=jnp.float32)
    w1_2 = jax.random.normal(kw12, (3, 3, C2, M2), dtype=jnp.float32) * 0.01
    b1_2 = jnp.zeros((M2,), dtype=jnp.float32)
    w2_2 = jax.random.normal(kw22, (M2, n_anchor), dtype=jnp.float32) * 0.01
    b2_2 = jnp.zeros((n_anchor,), dtype=jnp.float32)

    anchor2, pc2 = pgn_forward(x2, w1_2, b1_2, w2_2, b2_2, anchor_base, FEAT_STRIDE)
    pc2 = jax.block_until_ready(pc2)
    ref2 = jax.block_until_ready(
        pgn_reference(x2, w1_2, b1_2, w2_2, b2_2, cast_dtype=jnp.bfloat16))
    np.testing.assert_allclose(np.asarray(pc2), np.asarray(ref2),
                               rtol=1e-2, atol=1e-4)
    assert anchor2.shape == (H2 * W2 * n_anchor, 4)
    assert pc2.shape == (N2, H2 * W2 * n_anchor, 1)

    print("KERNEL_OK")
</pallas_src>

<mosaic_0001>
module attributes {stable_mosaic.version = 11 : i64} {
  func.func @_pgn_kernel(%arg0: i32, %arg1: i32, %arg2: memref<1x80x128xbf16, #tpu.memory_space<vmem>>, %arg3: memref<16x80xbf16, #tpu.memory_space<vmem>>, %arg4: memref<16x1xf32, #tpu.memory_space<vmem>>, %arg5: memref<8x16xbf16, #tpu.memory_space<vmem>>, %arg6: memref<8x1xf32, #tpu.memory_space<vmem>>, %arg7: memref<1x8x128xf32, #tpu.memory_space<vmem>>) attributes {dimension_semantics = [#tpu.dimension_semantics<parallel>, #tpu.dimension_semantics<parallel>], iteration_bounds = array<i64: 2, 1>, scalar_prefetch = 0 : i64, scratch_operands = 0 : i64, tpu.core_type = #tpu.core_type<tc>, window_params = [{transform_indices = @transform_0, window_bounds = array<i64: 1, 80, 128>}, {pipeline_mode = #tpu.pipeline_mode<synchronous>, transform_indices = @transform_1, window_bounds = array<i64: 16, 80>}, {pipeline_mode = #tpu.pipeline_mode<synchronous>, transform_indices = @transform_2, window_bounds = array<i64: 16, 1>}, {pipeline_mode = #tpu.pipeline_mode<synchronous>, transform_indices = @transform_3, window_bounds = array<i64: 8, 16>}, {pipeline_mode = #tpu.pipeline_mode<synchronous>, transform_indices = @transform_4, window_bounds = array<i64: 8, 1>}, {transform_indices = @transform_5, window_bounds = array<i64: 1, 8, 128>}]} {
    %c0 = arith.constant 0 : index
    %c0_0 = arith.constant 0 : index
    %0 = vector.load %arg3[%c0, %c0_0] : memref<16x80xbf16, #tpu.memory_space<vmem>>, vector<16x80xbf16>
    %c0_1 = arith.constant 0 : index
    %c0_2 = arith.constant 0 : index
    %c0_3 = arith.constant 0 : index
    %1 = vector.load %arg2[%c0_1, %c0_2, %c0_3] : memref<1x80x128xbf16, #tpu.memory_space<vmem>>, vector<1x80x128xbf16>
    %2 = vector.shape_cast %1 : vector<1x80x128xbf16> to vector<80x128xbf16>
    %cst = arith.constant dense<0.000000e+00> : vector<16x128xf32>
    %3 = tpu.matmul %0, %2, %cst {dimension_numbers = #tpu.dot_dimension_numbers<[1], [0], [0], [1], [0, 0, 1, 1], [], []>} : vector<16x80xbf16>, vector<80x128xbf16>, vector<16x128xf32> -> vector<16x128xf32>
    %c0_4 = arith.constant 0 : index
    %c0_5 = arith.constant 0 : index
    %4 = vector.load %arg4[%c0_4, %c0_5] : memref<16x1xf32, #tpu.memory_space<vmem>>, vector<16x1xf32>
    %5 = vector.broadcast %4 : vector<16x1xf32> to vector<16x128xf32>
    %6 = arith.addf %3, %5 : vector<16x128xf32>
    %cst_6 = arith.constant 0.000000e+00 : f32
    %7 = vector.broadcast %cst_6 : f32 to vector<16x128xf32>
    %8 = arith.maximumf %6, %7 : vector<16x128xf32>
    %9 = arith.truncf %8 : vector<16x128xf32> to vector<16x128xbf16>
    %c0_7 = arith.constant 0 : index
    %c0_8 = arith.constant 0 : index
    %10 = vector.load %arg5[%c0_7, %c0_8] : memref<8x16xbf16, #tpu.memory_space<vmem>>, vector<8x16xbf16>
    %cst_9 = arith.constant dense<0.000000e+00> : vector<8x128xf32>
    %11 = tpu.matmul %10, %9, %cst_9 {dimension_numbers = #tpu.dot_dimension_numbers<[1], [0], [0], [1], [0, 0, 1, 1], [], []>} : vector<8x16xbf16>, vector<16x128xbf16>, vector<8x128xf32> -> vector<8x128xf32>
    %c0_10 = arith.constant 0 : index
    %c0_11 = arith.constant 0 : index
    %12 = vector.load %arg6[%c0_10, %c0_11] : memref<8x1xf32, #tpu.memory_space<vmem>>, vector<8x1xf32>
    %13 = vector.broadcast %12 : vector<8x1xf32> to vector<8x128xf32>
    %14 = arith.addf %11, %13 : vector<8x128xf32>
    %c0_12 = arith.constant 0 : index
    %c0_13 = arith.constant 0 : index
    %c0_14 = arith.constant 0 : index
    %15 = vector.load %arg7[%c0_12, %c0_13, %c0_14] : memref<1x8x128xf32, #tpu.memory_space<vmem>>, vector<1x8x128xf32>
    %16 = vector.shape_cast %15 : vector<1x8x128xf32> to vector<8x128xf32>
    %17 = vector.shape_cast %14 : vector<8x128xf32> to vector<1x8x128xf32>
    tpu.vector_store %arg7[%c0_12, %c0_13, %c0_14], %17 {strides = array<i32>} : memref<1x8x128xf32, #tpu.memory_space<vmem>>, vector<1x8x128xf32>,
    return
  }
  func.func @transform_0(%arg0: i32, %arg1: i32) -> (i32, i32, i32) {
    %c0_i32 = arith.constant 0 : i32
    %c0_i32_0 = arith.constant 0 : i32
    return %arg0, %c0_i32, %arg1 : i32, i32, i32
  }
  func.func @transform_1(%arg0: i32, %arg1: i32) -> (i32, i32) {
    %c0_i32 = arith.constant 0 : i32
    %c0_i32_0 = arith.constant 0 : i32
    %c0_i32_1 = arith.constant 0 : i32
    return %c0_i32, %c0_i32_0 : i32, i32
  }
  func.func @transform_2(%arg0: i32, %arg1: i32) -> (i32, i32) {
    %c0_i32 = arith.constant 0 : i32
    %c0_i32_0 = arith.constant 0 : i32
    %c0_i32_1 = arith.constant 0 : i32
    return %c0_i32, %c0_i32_0 : i32, i32
  }
  func.func @transform_3(%arg0: i32, %arg1: i32) -> (i32, i32) {
    %c0_i32 = arith.constant 0 : i32
    %c0_i32_0 = arith.constant 0 : i32
    %c0_i32_1 = arith.constant 0 : i32
    return %c0_i32, %c0_i32_0 : i32, i32
  }
  func.func @transform_4(%arg0: i32, %arg1: i32) -> (i32, i32) {
    %c0_i32 = arith.constant 0 : i32
    %c0_i32_0 = arith.constant 0 : i32
    %c0_i32_1 = arith.constant 0 : i32
    return %c0_i32, %c0_i32_0 : i32, i32
  }
  func.func @transform_5(%arg0: i32, %arg1: i32) -> (i32, i32, i32) {
    %c0_i32 = arith.constant 0 : i32
    %c0_i32_0 = arith.constant 0 : i32
    return %arg0, %c0_i32, %arg1 : i32, i32, i32
  }
}

</mosaic_0001>

<llo_original>
// kernel: tpu_custom_call.1
$region0: #{tpu_custom_call.1}
  #allocation0 [shape = 'u32[]', space=smem, size = 0x4, offset = 0x4, fixed_abs, tag = 'smem constant byte address 0x4 - core index']
  #allocation1 [shape = 'u32[144,128]{1,0:T(1,128)}', space=vmem, size = 0x12000, scoped, tag = 'internal scratch']
  %s0 = inlined_call_operand.hbm [shape: bf16[2,80,128], index: 0, kind: input, shape index: {}]
  %s1 = inlined_call_operand.vmem [shape: bf16[16,80], index: 1, kind: input, shape index: {}]
  %s2 = inlined_call_operand.vmem [shape: f32[16,1], index: 2, kind: input, shape index: {}]
  %s3 = inlined_call_operand.vmem [shape: bf16[8,16], index: 3, kind: input, shape index: {}]
  %s4 = inlined_call_operand.vmem [shape: f32[8,1], index: 4, kind: input, shape index: {}]
  %s5 = inlined_call_operand.hbm [shape: f32[2,8,128], index: 5, kind: output, shape index: {}]
  %s6 = sld [smem:[#allocation0]]
  $region57: #{tpu_custom_call.1} parent=0
    _
  %s8 = ssub.s32 1, %s6
  %s9 = scalar_select 0, %s8, %s6
  $region1: #{tpu_custom_call.1} parent=0
    #allocation2 [shape = 'u8[40960]{0}', space=vmem, size = 0xa000, scoped, tag = 'input window, operand 0']
    #allocation3 [shape = 's32[2]{0}', space=sflag, size = 0x8, scoped, tag = 'scoped memory for tpu_custom_call.1']
    #allocation4 [shape = 's32[2]{0}', space=sflag, size = 0x8, scoped, tag = 'scoped memory for tpu_custom_call.1']
    #allocation5 [shape = 'u8[8192]{0}', space=vmem, size = 0x2000, scoped, tag = 'output window, operand 0']
    %10 = vsyncpa [#allocation3], 0
    %s11 = scalar_lea.sflag [#allocation3], 1
    %12 = vsyncpa %s11, 0
    %13 = vsyncpa [#allocation4], 0
    %s14 = scalar_lea.sflag [#allocation4], 1
    %15 = vsyncpa %s14, 0
    loop: start=0, step=1, limit=4
    $region2: #{tpu_custom_call.1} parent=1 // loop_pre_header
      _
    $region3: #{tpu_custom_call.1} parent=1 // loop_header
      %s17 = sphi 0, %s21
      %p18 = scmp.ge.s32.totalorder %s17, 4
      %s24 = sphi 0, %s36
      %s25 = sphi 0, %s32
      %s26 = sphi 0, %s24
      %s27 = sphi 0, %s25
      %s28 = sphi 0, %s26
      %s29 = sphi 0, %s27
      %s41 = sphi 0, %s43
      %s44 = sphi 0, %s41
      %s45 = sphi 0, %s44
      %s61 = sphi 0, %s45
      %s65 = sphi 0, %s65
      %s67 = sphi 0, %s65
      %s68 = sphi 0, %s67
      %s82 = sphi 0, %s68
      %s86 = sphi 0, %s86
      %s88 = sphi 0, %s86
      %s89 = sphi 0, %s88
      %s103 = sphi 0, %s89
      %s107 = sphi 0, %s107
      %s109 = sphi 0, %s107
      %s110 = sphi 0, %s109
      %s124 = sphi 0, %s110
      %s128 = sphi 0, %s128
      %s130 = sphi 0, %s128
      %s131 = sphi 0, %s130
      %s145 = sphi 0, %s131
      %s153 = sphi 0, %s155
      %s156 = sphi 0, %s153
      %s157 = sphi 0, %s156
      %s173 = sphi 0, %s157
    $region4: #{tpu_custom_call.1} parent=1 // loop_header_branch
      %20 = sbr.rel (%p18) target = $region8
    $region5: #{tpu_custom_call.1} parent=1 // loop_body
      %s22 = ssub.s32 %s17, 1
      %s23 = ssub.s32 %s17, 2
      %s30 = sadd.s32 1, %s25
      %p31 = scmp.ge.s32.totalorder %s30, 1
      %s32 = scalar_select %p31, 0, %s30
      %s33 = sadd.s32 1, %s24
      %s34 = scalar_select %p31, %s33, %s24
      %p35 = scmp.ge.s32.totalorder %s34, 2
      %s36 = scalar_select %p35, 0, %s34
      %s37 = ssub.s32 %s24, %s36
      %s38 = ssub.s32 %s25, %s32
      %s39 = sor.u32 %s37, %s38
      %p40 = scmp.eq.s32.totalorder %s39, 0
      %s42 = sadd.s32 %s41, 1
      %s43 = scalar_select %p40, %s41, %s42
      %p46 = pneg %p40
      %p47 = scmp.eq.s32.totalorder %s17, 1
      %p48 = por %p46, %p47
      %p49 = scmp.ne.s32.totalorder %s41, %s44
      %p50 = scmp.eq.s32.totalorder %s17, 0
      %p51 = por %p49, %p50
      %p52 = scmp.ne.s32.totalorder %s41, %s44
      %p53 = scmp.eq.s32.totalorder %s22, 1
      %p54 = por %p52, %p53
      %p55 = scmp.ne.s32.totalorder %s44, %s45
      %p56 = scmp.eq.s32.totalorder %s22, 0
      %p57 = por %p55, %p56
      %p58 = scmp.ne.s32.totalorder %s44, %s45
      %p59 = scmp.eq.s32.totalorder %s23, 1
      %p60 = por %p58, %p59
      %p62 = scmp.ne.s32.totalorder %s45, %s61
      %p63 = scmp.eq.s32.totalorder %s23, 0
      %p64 = por %p62, %p63
      %s66 = sadd.s32 %s65, 1
      %p69 = scmp.eq.s32.totalorder %s17, 1
      %p70 = scmp.ne.s32.totalorder %s65, %s67
      %p71 = scmp.eq.s32.totalorder %s17, 0
      %p72 = por %p70, %p71
      %p73 = scmp.ne.s32.totalorder %s65, %s67
      %p74 = scmp.eq.s32.totalorder %s22, 1
      %p75 = por %p73, %p74
      %p76 = scmp.ne.s32.totalorder %s67, %s68
      %p77 = scmp.eq.s32.totalorder %s22, 0
      %p78 = por %p76, %p77
      %p79 = scmp.ne.s32.totalorder %s67, %s68
      %p80 = scmp.eq.s32.totalorder %s23, 1
      %p81 = por %p79, %p80
      %p83 = scmp.ne.s32.totalorder %s68, %s82
      %p84 = scmp.eq.s32.totalorder %s23, 0
      %p85 = por %p83, %p84
      %s87 = sadd.s32 %s86, 1
      %p90 = scmp.eq.s32.totalorder %s17, 1
      %p91 = scmp.ne.s32.totalorder %s86, %s88
      %p92 = scmp.eq.s32.totalorder %s17, 0
      %p93 = por %p91, %p92
      %p94 = scmp.ne.s32.totalorder %s86, %s88
      %p95 = scmp.eq.s32.totalorder %s22, 1
      %p96 = por %p94, %p95
      %p97 = scmp.ne.s32.totalorder %s88, %s89
      %p98 = scmp.eq.s32.totalorder %s22, 0
      %p99 = por %p97, %p98
      %p100 = scmp.ne.s32.totalorder %s88, %s89
      %p101 = scmp.eq.s32.totalorder %s23, 1
      %p102 = por %p100, %p101
      %p104 = scmp.ne.s32.totalorder %s89, %s103
      %p105 = scmp.eq.s32.totalorder %s23, 0
      %p106 = por %p104, %p105
      %s108 = sadd.s32 %s107, 1
      %p111 = scmp.eq.s32.totalorder %s17, 1
      %p112 = scmp.ne.s32.totalorder %s107, %s109
      %p113 = scmp.eq.s32.totalorder %s17, 0
      %p114 = por %p112, %p113
      %p115 = scmp.ne.s32.totalorder %s107, %s109
      %p116 = scmp.eq.s32.totalorder %s22, 1
      %p117 = por %p115, %p116
      %p118 = scmp.ne.s32.totalorder %s109, %s110
      %p119 = scmp.eq.s32.totalorder %s22, 0
      %p120 = por %p118, %p119
      %p121 = scmp.ne.s32.totalorder %s109, %s110
      %p122 = scmp.eq.s32.totalorder %s23, 1
      %p123 = por %p121, %p122
      %p125 = scmp.ne.s32.totalorder %s110, %s124
      %p126 = scmp.eq.s32.totalorder %s23, 0
      %p127 = por %p125, %p126
      %s129 = sadd.s32 %s128, 1
      %p132 = scmp.eq.s32.totalorder %s17, 1
      %p133 = scmp.ne.s32.totalorder %s128, %s130
      %p134 = scmp.eq.s32.totalorder %s17, 0
      %p135 = por %p133, %p134
      %p136 = scmp.ne.s32.totalorder %s128, %s130
      %p137 = scmp.eq.s32.totalorder %s22, 1
      %p138 = por %p136, %p137
      %p139 = scmp.ne.s32.totalorder %s130, %s131
      %p140 = scmp.eq.s32.totalorder %s22, 0
      %p141 = por %p139, %p140
      %p142 = scmp.ne.s32.totalorder %s130, %s131
      %p143 = scmp.eq.s32.totalorder %s23, 1
      %p144 = por %p142, %p143
      %p146 = scmp.ne.s32.totalorder %s131, %s145
      %p147 = scmp.eq.s32.totalorder %s23, 0
      %p148 = por %p146, %p147
      %s149 = ssub.s32 %s24, %s36
      %s150 = ssub.s32 %s25, %s32
      %s151 = sor.u32 %s149, %s150
      %p152 = scmp.eq.s32.totalorder %s151, 0
      %s154 = sadd.s32 %s153, 1
      %s155 = scalar_select %p152, %s153, %s154
      %p158 = pneg %p152
      %p159 = scmp.eq.s32.totalorder %s17, 1
      %p160 = por %p158, %p159
      %p161 = scmp.ne.s32.totalorder %s153, %s156
      %p162 = scmp.eq.s32.totalorder %s17, 0
      %p163 = por %p161, %p162
      %p164 = scmp.ne.s32.totalorder %s153, %s156
      %p165 = scmp.eq.s32.totalorder %s22, 1
      %p166 = por %p164, %p165
      %p167 = scmp.ne.s32.totalorder %s156, %s157
      %p168 = scmp.eq.s32.totalorder %s22, 0
      %p169 = por %p167, %p168
      %p170 = scmp.ne.s32.totalorder %s156, %s157
      %p171 = scmp.eq.s32.totalorder %s23, 1
      %p172 = por %p170, %p171
      %p174 = scmp.ne.s32.totalorder %s157, %s173
      %p175 = scmp.eq.s32.totalorder %s23, 0
      %p176 = por %p174, %p175
      %p177 = scmp.le.s32.totalorder 1, %s17
      %p178 = scmp.lt.s32.totalorder %s17, 3
      %p179 = pnand %p177, %p178
      %p180 = pneg %p179
      // Predicated region
      $region9: #{tpu_custom_call.1} parent=5 // pred_check
        _
      $region10: #{tpu_custom_call.1} parent=5 // pred_check_branch
        %182 = sbr.rel (%p179) target = $region12
      $region11: #{tpu_custom_call.1} parent=5 // pred_region
        %s183 = ssub.s32 %s17, 1
        // Predicated region
        $region13: #{tpu_custom_call.1} parent=11 // pred_check
          %p184 = pneg %p78
        $region14: #{tpu_custom_call.1} parent=11 // pred_check_branch
          %186 = sbr.rel (%p184) target = $region16
        $region15: #{tpu_custom_call.1} parent=11 // pred_region
          _
        $region16: #{tpu_custom_call.1} parent=11 // pred_fallthru
          _
        // Predicated region
        $region17: #{tpu_custom_call.1} parent=11 // pred_check
          %p187 = pneg %p99
        $region18: #{tpu_custom_call.1} parent=11 // pred_check_branch
          %189 = sbr.rel (%p187) target = $region20
        $region19: #{tpu_custom_call.1} parent=11 // pred_region
          _
        $region20: #{tpu_custom_call.1} parent=11 // pred_fallthru
          _
        // Predicated region
        $region21: #{tpu_custom_call.1} parent=11 // pred_check
          %p190 = pneg %p120
        $region22: #{tpu_custom_call.1} parent=11 // pred_check_branch
          %192 = sbr.rel (%p190) target = $region24
        $region23: #{tpu_custom_call.1} parent=11 // pred_region
          _
        $region24: #{tpu_custom_call.1} parent=11 // pred_fallthru
          _
        // Predicated region
        $region25: #{tpu_custom_call.1} parent=11 // pred_check
          %p193 = pneg %p141
        $region26: #{tpu_custom_call.1} parent=11 // pred_check_branch
          %195 = sbr.rel (%p193) target = $region28
        $region27: #{tpu_custom_call.1} parent=11 // pred_region
          _
        $region28: #{tpu_custom_call.1} parent=11 // pred_fallthru
          _
      $region12: #{tpu_custom_call.1} parent=5 // pred_fallthru
        _
      %p196 = scmp.lt.s32.totalorder %s17, 2
      // Predicated region
      $region29: #{tpu_custom_call.1} parent=5 // pred_check
        %p197 = pneg %p196
      $region30: #{tpu_custom_call.1} parent=5 // pred_check_branch
        %199 = sbr.rel (%p197) target = $region32
      $region31: #{tpu_custom_call.1} parent=5 // pred_region
        // Predicated region
        $region33: #{tpu_custom_call.1} parent=31 // pred_check
          %p200 = pneg %p51
        $region34: #{tpu_custom_call.1} parent=31 // pred_check_branch
          %202 = sbr.rel (%p200) target = $region36
        $region35: #{tpu_custom_call.1} parent=31 // pred_region
          %s203 = sand.u32 %s41, 1
          %s204 = scalar_lea.sflag [#allocation3], %s203
          %s205 = sand.u32 %s41, 1
          %s206 = smul.addr %s205, 40
          %s207 = scalar_lea.vmem [#allocation2], %s206
          %s209 = ssub.s32 640, 640
          %210 = vsyncadd %s204, %s209
          %s211 = smul.addr %s24, 10
          %s212 = sadd.s32 %s25, %s211
          %s213 = smul.addr %s212, 64
          %s214 = scalar_lea.hbm %s0, %s213
          %s215 = sshll.u32 %s207, 4
          %s216 = int_to_ptr.vmem [resolvable:$true] %s215
          %221 = dma.hbm_to_vmem [thread:$0]  %s214, 640, %s216, %s204, 64, 64, 4
        $region36: #{tpu_custom_call.1} parent=31 // pred_fallthru
          _
      $region32: #{tpu_custom_call.1} parent=5 // pred_fallthru
        _
      %p222 = scmp.le.s32.totalorder 1, %s17
      %p223 = scmp.lt.s32.totalorder %s17, 3
      %p224 = pnand %p222, %p223
      %p225 = pneg %p224
      // Predicated region
      $region37: #{tpu_custom_call.1} parent=5 // pred_check
        _
      $region38: #{tpu_custom_call.1} parent=5 // pred_check_branch
        %227 = sbr.rel (%p224) target = $region40
      $region39: #{tpu_custom_call.1} parent=5 // pred_region
        %s228 = ssub.s32 %s17, 1
        %s229 = sand.u32 %s44, 1
        %s230 = scalar_lea.sflag [#allocation3], %s229
        %s231 = sand.u32 %s44, 1
        %s232 = smul.addr %s231, 40
        %s233 = scalar_lea.vmem [#allocation2], %s232
        // Predicated region
        $region41: #{tpu_custom_call.1} parent=39 // pred_check
          %p234 = pneg %p57
        $region42: #{tpu_custom_call.1} parent=39 // pred_check_branch
          %236 = sbr.rel (%p234) target = $region44
        $region43: #{tpu_custom_call.1} parent=39 // pred_region
          %237 = dma.done %s230, 640
        $region44: #{tpu_custom_call.1} parent=39 // pred_fallthru
          _
        %s238 = sand.u32 %s44, 1
        %s239 = scalar_lea.sflag [#allocation3], %s238
        %s240 = sand.u32 %s44, 1
        %s241 = smul.addr %s240, 40
        %s242 = scalar_lea.vmem [#allocation2], %s241
        %p243 = pneg %p57
        %p244 = pneg %p54
        %p245 = pneg %p78
        %p246 = pneg %p75
        %p247 = pneg %p99
        %p248 = pneg %p96
        %p249 = pneg %p120
        %p250 = pneg %p117
        %p251 = pneg %p141
        %p252 = pneg %p138
        %p253 = pneg %p169
        %p254 = pneg %p166
        %s255 = sand.u32 %s156, 1
        %s256 = scalar_lea.sflag [#allocation4], %s255
        %s257 = sand.u32 %s156, 1
        %s258 = smul.addr %s257, 8
        %s259 = scalar_lea.vmem [#allocation5], %s258
        %v261 = vld [vmem:[%s1] sm:$0xf]
        %v262 = vld [vmem:[%s1 + $0x4] sm:$0xf]
        %v263 = vld [vmem:[%s233] sm:$0xf]
        %v264 = vld [vmem:[%s233 + $0x4] sm:$0xf]
        %v265 = vld [vmem:[%s233 + $0x8] sm:$0xf]
        %v266 = vld [vmem:[%s233 + $0xc] sm:$0xf]
        %v267 = vld [vmem:[%s233 + $0x10] sm:$0xf]
        %v268 = vld [vmem:[%s233 + $0x14] sm:$0xf]
        %v269 = vld [vmem:[%s233 + $0x18] sm:$0xf]
        %v270 = vld [vmem:[%s233 + $0x1c] sm:$0xf]
        %v271 = vld [vmem:[%s233 + $0x20] sm:$0xf]
        %v272 = vld [vmem:[%s233 + $0x24] sm:$0xf]
        %v273 = vld [vmem:[%s2] sm:$0xff]
        %v274 = vld [vmem:[%s2 + $0x8] sm:$0xff]
        %276 = vset.pattern.permute.xlu0 0
        %277 = vperm.xlu0 %276, %v273
        %v278 = vpop.permute.xlu0 %277
        %281 = vset.pattern.permute.xlu0 0
        %282 = vperm.xlu0 %281, %v274
        %v283 = vpop.permute.xlu0 %282
        %v287 = vunpack.c.l.b16 %v261
        %v288 = vunpack.c.l.b16 %v262
        %v289 = vpack.c.b16 %v288, %v287
        %v300 = vunpack.c.l.b16 %v263
        %v301 = vunpack.c.l.b16 %v264
        %v302 = vunpack.c.l.b16 %v265
        %v303 = vunpack.c.l.b16 %v266
        %v304 = vunpack.c.l.b16 %v267
        %v305 = vunpack.c.l.b16 %v268
        %v306 = vunpack.c.l.b16 %v269
        %v307 = vunpack.c.l.b16 %v270
        %v308 = vunpack.c.l.b16 %v271
        %v309 = vunpack.c.l.b16 %v272
        %v310 = vpack.c.b16 %v301, %v300
        %v311 = vpack.c.b16 %v303, %v302
        %v312 = vpack.c.b16 %v305, %v304
        %v313 = vpack.c.b16 %v307, %v306
        %v314 = vpack.c.b16 %v309, %v308
        %vm320 = vcmask 654336
        %v322 = vsel %vm320, %v289, 0
        %324 = vmatprep.subr.bf16.mxu0 0
        %325 = vmatpush1.bf16.msra.mxu0 %v310
        %326 = vmatprep.subr.bf16.mxu0 0
        %327 = vmatpush1.bf16.msra.mxu0 %v311
        %328 = vmatprep.subr.bf16.mxu0 0
        %329 = vmatpush1.bf16.msra.mxu0 %v312
        %330 = vmatprep.subr.bf16.mxu0 0
        %331 = vmatpush1.bf16.msra.mxu0 %v313
        %332 = vmatprep.subr.bf16.mxu0 0
        %333 = vmatpush1.bf16.msra.mxu0 %v314
        %334 = vmatprep.subr.bf16.mxu0 0
        %335 = vmatpush1.bf16.msra.mxu0 0
        %336 = vmatprep.subr.bf16.mxu0 0
        %337 = vmatpush1.bf16.msra.mxu0 0
        %338 = vmatprep.subr.bf16.mxu0 0
        %339 = vmatpush1.bf16.msra.mxu0 0
        %340 = vmatprep.subr.bf16.mxu0 0
        %341 = vmatpush1.bf16.msra.mxu0 0
        %342 = vmatprep.subr.bf16.mxu0 0
        %343 = vmatpush1.bf16.msra.mxu0 0
        %344 = vmatprep.subr.bf16.mxu0 0
        %345 = vmatpush1.bf16.msra.mxu0 0
        %346 = vmatprep.subr.bf16.mxu0 0
        %347 = vmatpush1.bf16.msra.mxu0 0
        %348 = vmatprep.subr.bf16.mxu0 0
        %349 = vmatpush1.bf16.msra.mxu0 0
        %350 = vmatprep.subr.bf16.mxu0 0
        %351 = vmatpush1.bf16.msra.mxu0 0
        %352 = vmatprep.subr.bf16.mxu0 0
        %353 = vmatpush1.bf16.msra.mxu0 0
        %354 = vmatprep.subr.bf16.mxu0 0
        %355 = vmatpush1.bf16.msra.mxu0 0
        %356 = vmatprep.mubr.bf16.mxu0 0
        %357 = vmatmul.mubr.bf16.gmra.mrb[0].mxu0 %v322
        %v358 = vpop.f32.mrb[0].mxu0
        %v359 = vadd.f32 %v278, %v358
        %v360 = vpop.f32.mrb[0].mxu0
        %v361 = vpop.f32.mrb[0].mxu0
        %v362 = vadd.f32 %v283, %v361
        %v363 = vpop.f32.mrb[0].mxu0
        %364 = vdwg.mxu0
        %v365 = vmax.f32 %v359, 0.0
        %v366 = vmax.f32 %v362, 0.0
        %v367 = vpack.c.bf16 %v366, %v365
        %v368 = vld [vmem:[%s3] sm:$0xf]
        %v369 = vld [vmem:[%s4] sm:$0xff]
        %371 = vset.pattern.permute.xlu0 0
        %372 = vperm.xlu0 %371, %v369
        %v373 = vpop.permute.xlu0 %372
        %vm375 = vcmask 130048
        %v377 = vsel %vm375, %v368, 0
        %379 = vmatprep.subr.bf16.mxu0 0
        %380 = vmatpush1.bf16.msra.mxu0 %v367
        %381 = vmatprep.subr.bf16.mxu0 0
        %382 = vmatpush1.bf16.msra.mxu0 0
        %383 = vmatprep.subr.bf16.mxu0 0
        %384 = vmatpush1.bf16.msra.mxu0 0
        %385 = vmatprep.subr.bf16.mxu0 0
        %386 = vmatpush1.bf16.msra.mxu0 0
        %387 = vmatprep.subr.bf16.mxu0 0
        %388 = vmatpush1.bf16.msra.mxu0 0
        %389 = vmatprep.subr.bf16.mxu0 0
        %390 = vmatpush1.bf16.msra.mxu0 0
        %391 = vmatprep.subr.bf16.mxu0 0
        %392 = vmatpush1.bf16.msra.mxu0 0
        %393 = vmatprep.subr.bf16.mxu0 0
        %394 = vmatpush1.bf16.msra.mxu0 0
        %395 = vmatprep.subr.bf16.mxu0 0
        %396 = vmatpush1.bf16.msra.mxu0 0
        %397 = vmatprep.subr.bf16.mxu0 0
        %398 = vmatpush1.bf16.msra.mxu0 0
        %399 = vmatprep.subr.bf16.mxu0 0
        %400 = vmatpush1.bf16.msra.mxu0 0
        %401 = vmatprep.subr.bf16.mxu0 0
        %402 = vmatpush1.bf16.msra.mxu0 0
        %403 = vmatprep.subr.bf16.mxu0 0
        %404 = vmatpush1.bf16.msra.mxu0 0
        %405 = vmatprep.subr.bf16.mxu0 0
        %406 = vmatpush1.bf16.msra.mxu0 0
        %407 = vmatprep.subr.bf16.mxu0 0
        %408 = vmatpush1.bf16.msra.mxu0 0
        %409 = vmatprep.subr.bf16.mxu0 0
        %410 = vmatpush1.bf16.msra.mxu0 0
        %411 = vmatprep.mubr.bf16.mxu0 0
        %412 = vmatmul.mubr.bf16.gmra.mrb[0].mxu0 %v377
        %v413 = vpop.f32.mrb[0].mxu0
        %v414 = vadd.f32 %v373, %v413
        %v415 = vpop.f32.mrb[0].mxu0
        %v416 = vpop.f32.mrb[0].mxu0
        %v417 = vpop.f32.mrb[0].mxu0
        %418 = vdwg.mxu0
        %419 = vst [vmem:[%s259] sm:$0xff] %v414
        %s420 = sand.u32 %s156, 1
        %s421 = scalar_lea.sflag [#allocation4], %s420
        %s422 = sand.u32 %s156, 1
        %s423 = smul.addr %s422, 8
        %s424 = scalar_lea.vmem [#allocation5], %s423
        // Predicated region
        $region45: #{tpu_custom_call.1} parent=39 // pred_check
          %p425 = pneg %p166
        $region46: #{tpu_custom_call.1} parent=39 // pred_check_branch
          %427 = sbr.rel (%p425) target = $region48
        $region47: #{tpu_custom_call.1} parent=39 // pred_region
          %s429 = ssub.s32 128, 128
          %430 = vsyncadd %s421, %s429
          %s431 = sadd.s32 %s27, %s26
          %s432 = smul.addr %s431, 128
          %s433 = scalar_lea.hbm %s5, %s432
          %s435 = sshll.u32 %s424, 4
          %s436 = int_to_ptr.vmem [resolvable:$true] %s435
          %438 = dma.vmem_to_hbm [thread:$0]  %s436, 128, %s433, %s421
        $region48: #{tpu_custom_call.1} parent=39 // pred_fallthru
          _
      $region40: #{tpu_custom_call.1} parent=5 // pred_fallthru
        _
      %p439 = scmp.le.s32.totalorder 2, %s17
      // Predicated region
      $region49: #{tpu_custom_call.1} parent=5 // pred_check
        %p440 = pneg %p439
      $region50: #{tpu_custom_call.1} parent=5 // pred_check_branch
        %442 = sbr.rel (%p440) target = $region52
      $region51: #{tpu_custom_call.1} parent=5 // pred_region
        %s443 = ssub.s32 %s17, 2
        // Predicated region
        $region53: #{tpu_custom_call.1} parent=51 // pred_check
          %p444 = pneg %p172
        $region54: #{tpu_custom_call.1} parent=51 // pred_check_branch
          %446 = sbr.rel (%p444) target = $region56
        $region55: #{tpu_custom_call.1} parent=51 // pred_region
          %s447 = sand.u32 %s157, 1
          %s448 = scalar_lea.sflag [#allocation4], %s447
          %s449 = sand.u32 %s157, 1
          %s450 = smul.addr %s449, 8
          %s451 = scalar_lea.vmem [#allocation5], %s450
          %452 = dma.done %s448, 128
        $region56: #{tpu_custom_call.1} parent=51 // pred_fallthru
          _
      $region52: #{tpu_custom_call.1} parent=5 // pred_fallthru
        _
    $region6: #{tpu_custom_call.1} parent=1 // loop_footer
      %s21 = sadd.s32 1, %s17
    $region7: #{tpu_custom_call.1} parent=1 // loop_footer_branch
      %16 = sbr.rel target = $region3
    $region8: #{tpu_custom_call.1} parent=1 // loop_exit
      _
    %453 = vsyncpa [#allocation3], 1
    %s454 = scalar_lea.sflag [#allocation3], 1
    %455 = vsyncpa %s454, 1
    %456 = vsyncpa [#allocation4], 1
    %s457 = scalar_lea.sflag [#allocation4], 1
    %458 = vsyncpa %s457, 1

</llo_original>
